<compile_context>
chip_gen: v5e
topology: v5e:2x2
jax: 0.10.0
libtpu: 0.0.40
codegen_flags: <defaults>
</compile_context>

<pallas_src>
import jax
import jax.numpy as jnp
from jax.experimental import pallas as pl
from jax.experimental.pallas import tpu as pltpu

LEAKY_SLOPE = 0.01
BN_EPS = 1e-5
MXU_DTYPE = jnp.bfloat16          # matmul operand dtype (f32 accumulation)
VMEM_LIMIT = 48 * 1024 * 1024     # headroom under v7x's 64 MiB physical VMEM


def _leaky(x):
    return jnp.where(x >= 0, x, LEAKY_SLOPE * x)


def _compiler_params(n_axes):
    return pltpu.CompilerParams(
        dimension_semantics=("parallel",) * n_axes,
        vmem_limit_bytes=VMEM_LIMIT,
    )


# --------------------------------------------------------------------------------------
# ConvTranspose2d(C, C, 2, stride=2): kernel==stride, so it is one matmul per pixel tile
# (K=Cin, N=4*Cout).  The (di,dj) interleave back to (N, 2H, 2W, C) is a pure layout op
# done by XLA in the wrapper; it fuses with the subsequent pad/concat/dropout glue.
# --------------------------------------------------------------------------------------
def _convt_kernel(x_ref, w_ref, b_ref, o_ref):
    lhs = x_ref[...].astype(w_ref.dtype)
    o_ref[...] = (
        jnp.dot(lhs, w_ref[...], preferred_element_type=jnp.float32) + b_ref[...]
    )


def conv_transpose2x2(x_nhwc, w_torch, b):
    # x_nhwc: (N, H, W, Cin); w_torch: (Cin, Cout, 2, 2); b: (Cout,)
    N, H, W, Cin = x_nhwc.shape
    Cout = w_torch.shape[1]
    M = N * H * W
    x2d = x_nhwc.reshape(M, Cin)
    # columns ordered (di, dj, cout)
    wf = jnp.transpose(w_torch, (0, 2, 3, 1)).reshape(Cin, 4 * Cout).astype(MXU_DTYPE)
    bf = jnp.tile(b, 4).reshape(1, 4 * Cout).astype(jnp.float32)

    tm = M if M <= 1024 else 1024
    out = pl.pallas_call(
        _convt_kernel,
        out_shape=jax.ShapeDtypeStruct((M, 4 * Cout), jnp.float32),
        grid=(pl.cdiv(M, tm),),
        in_specs=[
            pl.BlockSpec((tm, Cin), lambda i: (i, 0)),
            pl.BlockSpec((Cin, 4 * Cout), lambda i: (0, 0)),
            pl.BlockSpec((1, 4 * Cout), lambda i: (0, 0)),
        ],
        out_specs=pl.BlockSpec((tm, 4 * Cout), lambda i: (i, 0)),
        compiler_params=_compiler_params(1),
    )(x2d, wf, bf)

    out = out.reshape(N, H, W, 2, 2, Cout)          # (n, i, j, di, dj, co)
    out = jnp.transpose(out, (0, 1, 3, 2, 4, 5))    # (n, i, di, j, dj, co)
    return out.reshape(N, 2 * H, 2 * W, Cout)


# --------------------------------------------------------------------------------------
# Fused 3x3 conv stages.  Each kernel:
#   elementwise pre-op (previous-BN affine + LeakyReLU / residual add)
#   -> cast to bf16 -> in-kernel im2col -> single (M, 9*Cin) x (9*Cin, Cout) MXU matmul
#   -> writes the raw conv output block + per-tile partial (sum, sumsq) for BatchNorm.
# --------------------------------------------------------------------------------------
def _conv_core(xp, w_ref, b_ref):
    # xp: (TH+2, W+2, Cin), already pre-activated (elementwise commutes with reflect pad).
    xp = xp.astype(w_ref.dtype)                                # bf16 before im2col build
    thp, wp, cin = xp.shape
    th, w = thp - 2, wp - 2
    taps = [
        xp[kh:kh + th, kw:kw + w, :].reshape(th * w, cin)
        for kh in range(3)
        for kw in range(3)
    ]
    lhs = jnp.concatenate(taps, axis=-1)                       # (TH*W, 9*Cin) bf16
    acc = jnp.dot(lhs, w_ref[...], preferred_element_type=jnp.float32)
    return acc + b_ref[...]                                    # conv bias (f32)


def _store_conv(acc, out_ref, st_ref):
    th, w, cout = out_ref.shape[1], out_ref.shape[2], out_ref.shape[3]
    out_ref[0] = acc.reshape(th, w, cout)
    s = jnp.sum(acc, axis=0, keepdims=True)
    ss = jnp.sum(acc * acc, axis=0, keepdims=True)
    st_ref[0, 0] = jnp.concatenate([s, ss], axis=0)            # (2, Cout) partial stats


def _conv_a_kernel(xd_ref, w_ref, b_ref, out_ref, st_ref):
    # dropout-applied x (pre-multiplied in wrapper) -> conv1a
    _store_conv(_conv_core(xd_ref[0, 0], w_ref, b_ref), out_ref, st_ref)


def _conv_b_kernel(r_ref, sc_ref, sh_ref, w_ref, b_ref, out_ref, st_ref):
    # BN(conv1a) + LeakyReLU -> conv1b
    y = _leaky(r_ref[0, 0] * sc_ref[...] + sh_ref[...])
    _store_conv(_conv_core(y, w_ref, b_ref), out_ref, st_ref)


def _conv_c_kernel(xd_ref, r_ref, sc_ref, sh_ref, w_ref, b_ref, out_ref, st_ref):
    # residual: x_dropped + BN(conv1b), then LeakyReLU -> conv2a
    y = _leaky(xd_ref[0, 0] + r_ref[0, 0] * sc_ref[...] + sh_ref[...])
    _store_conv(_conv_core(y, w_ref, b_ref), out_ref, st_ref)


def conv3x3_stage(kernel, blocked, smalls, N, H, W, th, cout):
    """blocked: halo'd (N, nH, th+2, W+2, C) inputs; smalls: small 2D params (VMEM-resident)."""
    nh = H // th
    in_specs = []
    for a in blocked:
        in_specs.append(
            pl.BlockSpec((1, 1, th + 2, W + 2, a.shape[-1]),
                         lambda n, h: (n, h, 0, 0, 0)))
    for a in smalls:
        in_specs.append(pl.BlockSpec(a.shape, lambda n, h: (0, 0)))

    raw, stats = pl.pallas_call(
        kernel,
        grid=(N, nh),
        in_specs=in_specs,
        out_specs=[
            pl.BlockSpec((1, th, W, cout), lambda n, h: (n, h, 0, 0)),
            pl.BlockSpec((1, 1, 2, cout), lambda n, h: (n, h, 0, 0)),
        ],
        out_shape=[
            jax.ShapeDtypeStruct((N, H, W, cout), jnp.float32),
            jax.ShapeDtypeStruct((N, nh, 2, cout), jnp.float32),
        ],
        compiler_params=_compiler_params(2),
    )(*blocked, *smalls)
    return raw, stats


# --------------------------------------------------------------------------------------
# Final BatchNorm + LeakyReLU (per-channel affine computed in the wrapper from the stats).
# --------------------------------------------------------------------------------------
def _bn_act_kernel(r_ref, sc_ref, sh_ref, o_ref):
    o_ref[...] = _leaky(r_ref[...] * sc_ref[...] + sh_ref[...])


def bn_act(r_nhwc, scale, shift):
    N, H, W, C = r_nhwc.shape
    M = N * H * W
    r2d = r_nhwc.reshape(M, C)
    tm = M if M <= 2048 else 2048
    out = pl.pallas_call(
        _bn_act_kernel,
        out_shape=jax.ShapeDtypeStruct((M, C), jnp.float32),
        grid=(pl.cdiv(M, tm),),
        in_specs=[
            pl.BlockSpec((tm, C), lambda i: (i, 0)),
            pl.BlockSpec((1, C), lambda i: (0, 0)),
            pl.BlockSpec((1, C), lambda i: (0, 0)),
        ],
        out_specs=pl.BlockSpec((tm, C), lambda i: (i, 0)),
        compiler_params=_compiler_params(1),
    )(r2d, scale, shift)
    return out.reshape(N, H, W, C)


# --------------------------------------------------------------------------------------
# Wrapper-side helpers (tiny XLA glue that fuses into single memory passes).
# --------------------------------------------------------------------------------------
def _pick_row_tile(H, W, max_rows=2048):
    # Largest divisor of H with th*W pixel rows per tile, keeping the in-VMEM im2col slab
    # (th*W, 9*Cin) comfortably inside the VMEM budget with double-buffered blocks.
    th = 1
    for d in range(1, H + 1):
        if H % d == 0 and d * W <= max_rows:
            th = d
    return th


def _to_blocks(x_nhwc, th):
    # ReflectionPad2d(1) + split H into row blocks with a 1-row halo on each side.
    N, H, W, C = x_nhwc.shape
    xp = jnp.pad(x_nhwc, ((0, 0), (1, 1), (1, 1), (0, 0)), mode="reflect")
    nh = H // th
    blocks = [xp[:, i * th: i * th + th + 2, :, :] for i in range(nh)]
    return jnp.stack(blocks, axis=1)          # (N, nH, th+2, W+2, C)


def _w_taps(w_torch):
    # (Cout, Cin, 3, 3) -> (9*Cin, Cout), taps ordered (kh, kw, cin); bf16 MXU operand.
    cin, cout = w_torch.shape[1], w_torch.shape[0]
    return jnp.transpose(w_torch, (2, 3, 1, 0)).reshape(9 * cin, cout).astype(MXU_DTYPE)


def _bn_scale_shift(stats, gamma, beta, count):
    # TODO(synk): BatchNorm running_mean/running_var buffers are not tracked (training
    # forward only; biased batch statistics are used for normalization, as torch does).
    s = jnp.sum(stats, axis=(0, 1))                        # (2, C): [sum, sumsq]
    mean = s[0] / count
    var = jnp.maximum(s[1] / count - mean * mean, 0.0)
    scale = gamma * jax.lax.rsqrt(var + BN_EPS)
    shift = beta - mean * scale
    return (scale.reshape(1, -1).astype(jnp.float32),
            shift.reshape(1, -1).astype(jnp.float32))


def _dropout_mask(key, shape, rate):
    # TODO(synk): RNG stream differs from torch; Bernoulli(keep=1-p) + 1/(1-p) scaling match.
    keep = jax.random.bernoulli(key, 1.0 - rate, shape)
    return keep.astype(jnp.float32) * (1.0 / (1.0 - rate))


def _pad_hw(x_nhwc, pad_h, pad_w):
    # lax.pad handles negative amounts (cropping), matching torch F.pad semantics.
    cfg = [(0, 0, 0), (pad_h[0], pad_h[1], 0), (pad_w[0], pad_w[1], 0), (0, 0, 0)]
    return jax.lax.pad(x_nhwc, jnp.array(0.0, x_nhwc.dtype), cfg)


# --------------------------------------------------------------------------------------
# `up.forward`
# --------------------------------------------------------------------------------------
def up_forward(x1_nchw, x2_nchw, params, *, drop_rate=0.3, rng_key=None):
    if rng_key is None:
        rng_key = jax.random.PRNGKey(0)
    x1 = jnp.transpose(x1_nchw, (0, 2, 3, 1)).astype(jnp.float32)   # NCHW -> NHWC
    x2 = jnp.transpose(x2_nchw, (0, 2, 3, 1)).astype(jnp.float32)

    x1 = conv_transpose2x2(x1, params["up_w"], params["up_b"])

    diffX = x1.shape[1] - x2.shape[1]   # torch dim 2 (H)
    diffY = x1.shape[2] - x2.shape[2]   # torch dim 3 (W)
    # Faithful to the reference: F.pad pads W with diffX halves and H with diffY halves.
    x2 = _pad_hw(x2, (diffY // 2, int(diffY / 2)), (diffX // 2, int(diffX / 2)))
    x = jnp.concatenate([x2, x1], axis=-1)          # torch.cat([x2, x1], dim=1)

    N, H, W, C = x.shape
    count = float(N * H * W)

    # Dropout applied before the reflect pad, exactly as in torch; pre-multiplying here
    # fuses with the pad/concat glue and halves the halo'd-block DMA traffic below.
    xd = x * _dropout_mask(rng_key, x.shape, drop_rate)

    th = _pick_row_tile(H, W)
    xdb = _to_blocks(xd, th)                        # (N, nH, th+2, W+2, C)

    out_ch = params["w1a"].shape[0]
    in_ch = params["w1b"].shape[0]

    # Stage 1: x_drop -> conv1a (raw output + partial BN stats)
    r1, st1 = conv3x3_stage(
        _conv_a_kernel, [xdb],
        [_w_taps(params["w1a"]), params["b1a"].reshape(1, -1)], N, H, W, th, out_ch)
    sc1, sh1 = _bn_scale_shift(st1, params["g1a"], params["be1a"], count)

    # Stage 2: BN1 + LeakyReLU (fused pre-op) -> conv1b
    r1b = _to_blocks(r1, th)
    r2, st2 = conv3x3_stage(
        _conv_b_kernel, [r1b],
        [sc1, sh1, _w_taps(params["w1b"]), params["b1b"].reshape(1, -1)],
        N, H, W, th, in_ch)
    sc2, sh2 = _bn_scale_shift(st2, params["g1b"], params["be1b"], count)

    # Stage 3: residual (x_drop + BN2(conv1b)) -> LeakyReLU -> conv2a (all fused)
    r2b = _to_blocks(r2, th)
    r3, st3 = conv3x3_stage(
        _conv_c_kernel, [xdb, r2b],
        [sc2, sh2, _w_taps(params["w2a"]), params["b2a"].reshape(1, -1)],
        N, H, W, th, out_ch)
    sc3, sh3 = _bn_scale_shift(st3, params["g2a"], params["be2a"], count)

    # Stage 4: final BN + LeakyReLU
    out = bn_act(r3, sc3, sh3)
    return jnp.transpose(out, (0, 3, 1, 2))          # back to NCHW


# --------------------------------------------------------------------------------------
# Deterministic parameter init (matches the torch module's parameter shapes).
# --------------------------------------------------------------------------------------
def init_params(key, in_ch, out_ch):
    c2 = in_ch // 2
    ks = jax.random.split(key, 14)

    def nrm(k, shape, scale=0.2):
        return scale * jax.random.normal(k, shape, jnp.float32)

    p = {}
    p["up_w"] = nrm(ks[0], (c2, c2, 2, 2), 0.3)   # ConvTranspose2d weight (Cin, Cout, 2, 2)
    p["up_b"] = nrm(ks[1], (c2,), 0.1)
    p["w1a"] = nrm(ks[2], (out_ch, in_ch, 3, 3))
    p["b1a"] = nrm(ks[3], (out_ch,), 0.1)
    p["g1a"] = 1.0 + 0.1 * jax.random.normal(ks[4], (out_ch,), jnp.float32)
    p["be1a"] = nrm(ks[5], (out_ch,), 0.1)
    p["w1b"] = nrm(ks[6], (in_ch, out_ch, 3, 3))
    p["b1b"] = nrm(ks[7], (in_ch,), 0.1)
    p["g1b"] = 1.0 + 0.1 * jax.random.normal(ks[8], (in_ch,), jnp.float32)
    p["be1b"] = nrm(ks[9], (in_ch,), 0.1)
    p["w2a"] = nrm(ks[10], (out_ch, in_ch, 3, 3))
    p["b2a"] = nrm(ks[11], (out_ch,), 0.1)
    p["g2a"] = 1.0 + 0.1 * jax.random.normal(ks[12], (out_ch,), jnp.float32)
    p["be2a"] = nrm(ks[13], (out_ch,), 0.1)
    return p


if __name__ == "__main__":
    in_ch, out_ch = 8, 4
    key = jax.random.PRNGKey(0)
    kp, k1, k2, kd = jax.random.split(key, 4)
    params = init_params(kp, in_ch, out_ch)

    # x1: decoder feature (N, in_ch//2, 8, 8); x2: skip feature (N, in_ch//2, 16, 16)
    x1 = jax.random.normal(k1, (2, in_ch // 2, 8, 8), jnp.float32)
    x2 = jax.random.normal(k2, (2, in_ch // 2, 16, 16), jnp.float32)

    out = up_forward(x1, x2, params, drop_rate=0.3, rng_key=kd)
    out = jax.block_until_ready(out)
    assert out.shape == (2, out_ch, 16, 16), out.shape
    assert bool(jnp.all(jnp.isfinite(out)))
    print("KERNEL_OK")
</pallas_src>

<mosaic_0001>
module attributes {stable_mosaic.version = 11 : i64} {
  func.func @_convt_kernel(%arg0: i32, %arg1: memref<128x4xf32, #tpu.memory_space<vmem>>, %arg2: memref<4x16xbf16, #tpu.memory_space<vmem>>, %arg3: memref<1x16xf32, #tpu.memory_space<vmem>>, %arg4: memref<128x16xf32, #tpu.memory_space<vmem>>) attributes {dimension_semantics = [#tpu.dimension_semantics<parallel>], iteration_bounds = array<i64: 1>, scalar_prefetch = 0 : i64, scratch_operands = 0 : i64, tpu.core_type = #tpu.core_type<tc>, window_params = [{transform_indices = @transform_0, window_bounds = array<i64: 128, 4>}, {pipeline_mode = #tpu.pipeline_mode<synchronous>, transform_indices = @transform_1, window_bounds = array<i64: 4, 16>}, {pipeline_mode = #tpu.pipeline_mode<synchronous>, transform_indices = @transform_2, window_bounds = array<i64: 1, 16>}, {transform_indices = @transform_3, window_bounds = array<i64: 128, 16>}]} {
    %c0 = arith.constant 0 : index
    %c0_0 = arith.constant 0 : index
    %0 = vector.load %arg1[%c0, %c0_0] : memref<128x4xf32, #tpu.memory_space<vmem>>, vector<128x4xf32>
    %1 = arith.truncf %0 : vector<128x4xf32> to vector<128x4xbf16>
    %c0_1 = arith.constant 0 : index
    %c0_2 = arith.constant 0 : index
    %2 = vector.load %arg2[%c0_1, %c0_2] : memref<4x16xbf16, #tpu.memory_space<vmem>>, vector<4x16xbf16>
    %cst = arith.constant dense<0.000000e+00> : vector<128x16xf32>
    %3 = tpu.matmul %1, %2, %cst {dimension_numbers = #tpu.dot_dimension_numbers<[1], [0], [0], [1], [0, 0, 1, 1], [], []>} : vector<128x4xbf16>, vector<4x16xbf16>, vector<128x16xf32> -> vector<128x16xf32>
    %c0_3 = arith.constant 0 : index
    %c0_4 = arith.constant 0 : index
    %4 = vector.load %arg3[%c0_3, %c0_4] : memref<1x16xf32, #tpu.memory_space<vmem>>, vector<1x16xf32>
    %5 = vector.broadcast %4 : vector<1x16xf32> to vector<128x16xf32>
    %6 = arith.addf %3, %5 : vector<128x16xf32>
    %c0_5 = arith.constant 0 : index
    %c0_6 = arith.constant 0 : index
    %7 = vector.load %arg4[%c0_5, %c0_6] : memref<128x16xf32, #tpu.memory_space<vmem>>, vector<128x16xf32>
    tpu.vector_store %arg4[%c0_5, %c0_6], %6 {strides = array<i32>} : memref<128x16xf32, #tpu.memory_space<vmem>>, vector<128x16xf32>,
    return
  }
  func.func @transform_0(%arg0: i32) -> (i32, i32) {
    %c0_i32 = arith.constant 0 : i32
    %c0_i32_0 = arith.constant 0 : i32
    return %arg0, %c0_i32 : i32, i32
  }
  func.func @transform_1(%arg0: i32) -> (i32, i32) {
    %c0_i32 = arith.constant 0 : i32
    %c0_i32_0 = arith.constant 0 : i32
    %c0_i32_1 = arith.constant 0 : i32
    return %c0_i32, %c0_i32_0 : i32, i32
  }
  func.func @transform_2(%arg0: i32) -> (i32, i32) {
    %c0_i32 = arith.constant 0 : i32
    %c0_i32_0 = arith.constant 0 : i32
    %c0_i32_1 = arith.constant 0 : i32
    return %c0_i32, %c0_i32_0 : i32, i32
  }
  func.func @transform_3(%arg0: i32) -> (i32, i32) {
    %c0_i32 = arith.constant 0 : i32
    %c0_i32_0 = arith.constant 0 : i32
    return %arg0, %c0_i32 : i32, i32
  }
}

</mosaic_0001>

<llo_original>
// kernel: tpu_custom_call.1
$region0: #{tpu_custom_call.1}
  #allocation0 [shape = 'u32[]', space=smem, size = 0x4, offset = 0x4, fixed_abs, tag = 'smem constant byte address 0x4 - core index']
  #allocation1 [shape = 'u32[72,128]{1,0:T(1,128)}', space=vmem, size = 0x9000, scoped, tag = 'internal scratch']
  %s0 = inlined_call_operand.vmem [shape: f32[128,4], index: 0, kind: input, shape index: {}]
  %s1 = inlined_call_operand.vmem [shape: bf16[4,16], index: 1, kind: input, shape index: {}]
  %s2 = inlined_call_operand.vmem [shape: f32[1,16], index: 2, kind: input, shape index: {}]
  %s3 = inlined_call_operand.vmem [shape: f32[128,16], index: 3, kind: output, shape index: {}]
  %s4 = sld [smem:[#allocation0]]
  $region22: #{tpu_custom_call.1} parent=0
    _
  %s6 = ssub.s32 1, %s4
  %s7 = scalar_select 0, %s6, %s4
  // Predicated region
  $region2: #{tpu_custom_call.1} parent=0 // pred_check
    _
  $region3: #{tpu_custom_call.1} parent=0 // pred_check_branch
    %9 = sbr.rel (0) target = $region5
  $region4: #{tpu_custom_call.1} parent=0 // pred_region
    _
  $region5: #{tpu_custom_call.1} parent=0 // pred_fallthru
    _
  // Predicated region
  $region6: #{tpu_custom_call.1} parent=0 // pred_check
    _
  $region7: #{tpu_custom_call.1} parent=0 // pred_check_branch
    %11 = sbr.rel (0) target = $region9
  $region8: #{tpu_custom_call.1} parent=0 // pred_region
    _
  $region9: #{tpu_custom_call.1} parent=0 // pred_fallthru
    _
  // Predicated region
  $region10: #{tpu_custom_call.1} parent=0 // pred_check
    _
  $region11: #{tpu_custom_call.1} parent=0 // pred_check_branch
    %13 = sbr.rel (0) target = $region13
  $region12: #{tpu_custom_call.1} parent=0 // pred_region
    _
  $region13: #{tpu_custom_call.1} parent=0 // pred_fallthru
    _
  %v15 = vld [vmem:[%s0] sm:$0xff]
  %v16 = vld [vmem:[%s0 + $0x8] sm:$0xff]
  %v17 = vld [vmem:[%s0 + $0x10] sm:$0xff]
  %v18 = vld [vmem:[%s0 + $0x18] sm:$0xff]
  %v19 = vld [vmem:[%s0 + $0x20] sm:$0xff]
  %v20 = vld [vmem:[%s0 + $0x28] sm:$0xff]
  %v21 = vld [vmem:[%s0 + $0x30] sm:$0xff]
  %v22 = vld [vmem:[%s0 + $0x38] sm:$0xff]
  %v23 = vld [vmem:[%s0 + $0x40] sm:$0xff]
  %v24 = vld [vmem:[%s0 + $0x48] sm:$0xff]
  %v25 = vld [vmem:[%s0 + $0x50] sm:$0xff]
  %v26 = vld [vmem:[%s0 + $0x58] sm:$0xff]
  %v27 = vld [vmem:[%s0 + $0x60] sm:$0xff]
  %v28 = vld [vmem:[%s0 + $0x68] sm:$0xff]
  %v29 = vld [vmem:[%s0 + $0x70] sm:$0xff]
  %v30 = vld [vmem:[%s0 + $0x78] sm:$0xff]
  %v31 = vpack.c.bf16 %v16, %v15
  %v32 = vpack.c.bf16 %v18, %v17
  %v33 = vpack.c.bf16 %v20, %v19
  %v34 = vpack.c.bf16 %v22, %v21
  %v35 = vpack.c.bf16 %v24, %v23
  %v36 = vpack.c.bf16 %v26, %v25
  %v37 = vpack.c.bf16 %v28, %v27
  %v38 = vpack.c.bf16 %v30, %v29
  %v39 = vld [vmem:[%s1] sm:$0x3]
  %v40 = vld [vmem:[%s2] sm:$0x1]
  %v42 = vperm.slane %v40, 0
  %vm44 = vcmask 31744
  %v46 = vsel %vm44, %v31, 0
  %v49 = vsel %vm44, %v32, 0
  %v52 = vsel %vm44, %v33, 0
  %v55 = vsel %vm44, %v34, 0
  %v58 = vsel %vm44, %v35, 0
  %v61 = vsel %vm44, %v36, 0
  %v64 = vsel %vm44, %v37, 0
  %v67 = vsel %vm44, %v38, 0
  %vm69 = vcmask 1041408
  %v71 = vsel %vm69, %v39, 0
  %73 = vmatpush.bf16.msra.mxu0 0
  %74 = vmatpush.bf16.msra.mxu0 0
  %75 = vmatpush.bf16.msra.mxu0 0
  %76 = vmatpush.bf16.msra.mxu0 0
  %77 = vmatpush.bf16.msra.mxu0 0
  %78 = vmatpush.bf16.msra.mxu0 0
  %79 = vmatpush.bf16.msra.mxu0 0
  %80 = vmatpush.bf16.msra.mxu0 %v71
  %81 = vmatmul.bf16.gmra.mxu0 %v46
  %v82 = vpop.f32.mrf.mxu0
  %v83 = vadd.f32 %v42, %v82
  %v84 = vpop.f32.mrf.mxu0
  %v85 = vadd.f32 %v42, %v84
  %86 = vmatmul.bf16.gmra.mxu0 %v49
  %v87 = vpop.f32.mrf.mxu0
  %v88 = vadd.f32 %v42, %v87
  %v89 = vpop.f32.mrf.mxu0
  %v90 = vadd.f32 %v42, %v89
  %91 = vmatmul.bf16.gmra.mxu0 %v52
  %v92 = vpop.f32.mrf.mxu0
  %v93 = vadd.f32 %v42, %v92
  %v94 = vpop.f32.mrf.mxu0
  %v95 = vadd.f32 %v42, %v94
  %96 = vmatmul.bf16.gmra.mxu0 %v55
  %v97 = vpop.f32.mrf.mxu0
  %v98 = vadd.f32 %v42, %v97
  %v99 = vpop.f32.mrf.mxu0
  %v100 = vadd.f32 %v42, %v99
  %101 = vmatmul.bf16.gmra.mxu0 %v58
  %v102 = vpop.f32.mrf.mxu0
  %v103 = vadd.f32 %v42, %v102
  %v104 = vpop.f32.mrf.mxu0
  %v105 = vadd.f32 %v42, %v104
  %106 = vmatmul.bf16.gmra.mxu0 %v61
  %v107 = vpop.f32.mrf.mxu0
  %v108 = vadd.f32 %v42, %v107
  %v109 = vpop.f32.mrf.mxu0
  %v110 = vadd.f32 %v42, %v109
  %111 = vmatmul.bf16.gmra.mxu0 %v64
  %v112 = vpop.f32.mrf.mxu0
  %v113 = vadd.f32 %v42, %v112
  %v114 = vpop.f32.mrf.mxu0
  %v115 = vadd.f32 %v42, %v114
  %116 = vmatmul.bf16.gmra.mxu0 %v67
  %v117 = vpop.f32.mrf.mxu0
  %v118 = vadd.f32 %v42, %v117
  %v119 = vpop.f32.mrf.mxu0
  %v120 = vadd.f32 %v42, %v119
  %121 = vdwg.mxu0
  %vm122 = vcmask 130048
  %123 = vst.msk [vmem:[%s3] sm:$0xff] %vm122, %v83
  %124 = vst.msk [vmem:[%s3 + $0x8] sm:$0xff] %vm122, %v85
  %125 = vst.msk [vmem:[%s3 + $0x10] sm:$0xff] %vm122, %v88
  %126 = vst.msk [vmem:[%s3 + $0x18] sm:$0xff] %vm122, %v90
  %127 = vst.msk [vmem:[%s3 + $0x20] sm:$0xff] %vm122, %v93
  %128 = vst.msk [vmem:[%s3 + $0x28] sm:$0xff] %vm122, %v95
  %129 = vst.msk [vmem:[%s3 + $0x30] sm:$0xff] %vm122, %v98
  %130 = vst.msk [vmem:[%s3 + $0x38] sm:$0xff] %vm122, %v100
  %131 = vst.msk [vmem:[%s3 + $0x40] sm:$0xff] %vm122, %v103
  %132 = vst.msk [vmem:[%s3 + $0x48] sm:$0xff] %vm122, %v105
  %133 = vst.msk [vmem:[%s3 + $0x50] sm:$0xff] %vm122, %v108
  %134 = vst.msk [vmem:[%s3 + $0x58] sm:$0xff] %vm122, %v110
  %135 = vst.msk [vmem:[%s3 + $0x60] sm:$0xff] %vm122, %v113
  %136 = vst.msk [vmem:[%s3 + $0x68] sm:$0xff] %vm122, %v115
  %137 = vst.msk [vmem:[%s3 + $0x70] sm:$0xff] %vm122, %v118
  %138 = vst.msk [vmem:[%s3 + $0x78] sm:$0xff] %vm122, %v120
  // Predicated region
  $region14: #{tpu_custom_call.1} parent=0 // pred_check
    _
  $region15: #{tpu_custom_call.1} parent=0 // pred_check_branch
    %140 = sbr.rel (0) target = $region17
  $region16: #{tpu_custom_call.1} parent=0 // pred_region
    _
  $region17: #{tpu_custom_call.1} parent=0 // pred_fallthru
    _
  // Predicated region
  $region18: #{tpu_custom_call.1} parent=0 // pred_check
    _
  $region19: #{tpu_custom_call.1} parent=0 // pred_check_branch
    %142 = sbr.rel (0) target = $region21
  $region20: #{tpu_custom_call.1} parent=0 // pred_region
    _
  $region21: #{tpu_custom_call.1} parent=0 // pred_fallthru
    _

</llo_original>
